<compile_context>
chip_gen: v7x
topology: tpu7x:2x2x1
jax: 0.10.0
libtpu: 0.0.40
codegen_flags: <defaults>
</compile_context>

<pallas_src>
import functools

import jax
import jax.numpy as jnp
from jax.experimental import pallas as pl
from jax.experimental.pallas import tpu as pltpu


def textcnn_kernel(ids_ref, params_ref, out_ref, *,
                   T, V, NC, n_classes, row_cbias, row_decw, row_decb):
    """Fused one-hot gather -> (conv+avgpool folded) matmul -> ReLU -> linear."""
    B = ids_ref.shape[0]
    TV = T * V
    ids = ids_ref[...]                                           # (B, T) int32

    # Flat one-hot over the joint (time, vocab) axis:
    #   onehot[b, t*V + v] = (ids[b, t] == v)
    lane = jax.lax.broadcasted_iota(jnp.int32, (B, TV), 1)       # (B, T*V)
    onehot = (lane == ids[:, 0:1]).astype(jnp.float32)           # init with t=0 term
    for t in range(1, T):                                        # T is small & static
        onehot = onehot + (lane == (ids[:, t:t + 1] + t * V)).astype(jnp.float32)

    # Embedding gather + all conv branches + AdaptiveAvgPool1d(1) == one matmul.
    m = params_ref[0:TV, :]                                      # (T*V, NC)
    pooled = jnp.dot(onehot, m, preferred_element_type=jnp.float32)   # (B, NC)

    # Conv bias is position-independent and the pool is a mean, so adding it
    # after pooling is exact.  ReLU comes after pooling (matches the module).
    cbias = params_ref[row_cbias:row_cbias + 1, :]               # (1, NC)
    pooled = jnp.maximum(pooled + cbias, 0.0)

    # Dropout(0.5) is identity at inference.  Decoder: (B, NC) @ (NC, n_classes).
    dec_w = params_ref[row_decw:row_decw + NC, 0:n_classes]      # (NC, n_classes)
    dec_b = params_ref[row_decb:row_decb + 1, 0:n_classes]       # (1, n_classes)
    logits = jnp.dot(pooled, dec_w, preferred_element_type=jnp.float32) + dec_b
    out_ref[...] = logits.astype(out_ref.dtype)


def make_params(key, vocab_size, embed_size, kernel_sizes, num_channels):
    """Parameters in the original PyTorch layouts."""
    keys = jax.random.split(key, 4 + 2 * len(kernel_sizes))
    C = 2 * embed_size
    params = {
        "emb": 0.1 * jax.random.normal(keys[0], (vocab_size, embed_size), jnp.float32),
        "const_emb": 0.1 * jax.random.normal(keys[1], (vocab_size, embed_size), jnp.float32),
        "dec_w": 0.1 * jax.random.normal(keys[2], (2, sum(num_channels)), jnp.float32),
        "dec_b": 0.1 * jax.random.normal(keys[3], (2,), jnp.float32),
        "convs": [],
    }
    for i, (c, k) in enumerate(zip(num_channels, kernel_sizes)):
        w = 0.1 * jax.random.normal(keys[4 + 2 * i], (c, C, k), jnp.float32)  # torch (c_out, C, k)
        b = 0.1 * jax.random.normal(keys[5 + 2 * i], (c,), jnp.float32)
        params["convs"].append((w, b))
    return params


def prepare_params(params, T):
    """One-time parameter preprocessing: exact folding + packing into one buffer."""
    emb, const_emb = params["emb"], params["const_emb"]
    V, E = emb.shape
    # Channel order matches torch.cat((emb, const_emb), dim=2).
    table = jnp.concatenate([emb, const_emb], axis=-1)           # (V, 2E)

    w_eff_branches, biases = [], []
    for w, b in params["convs"]:                                 # w: (c_out, C, k)
        c_out, C, k = w.shape
        l_out = T - k + 1
        cols = []
        for t in range(T):
            j_lo = max(0, t - l_out + 1)
            j_hi = min(k - 1, t)
            # Effective (pool-folded) weight seen by input position t; the
            # per-branch 1/l_out is folded in here (branches have different k).
            cols.append(jnp.sum(w[:, :, j_lo:j_hi + 1], axis=-1).T / l_out)  # (C, c_out)
        w_eff_branches.append(jnp.stack(cols, axis=0))           # (T, C, c_out)
        biases.append(b)
    w_eff = jnp.concatenate(w_eff_branches, axis=-1)             # (T, C, NC)
    conv_bias = jnp.concatenate(biases, axis=-1)                 # (NC,)
    NC = int(conv_bias.shape[0])

    # Fold the embedding table into the pooled-conv weight:
    #   M[t*V + v, o] = table[v, :] . w_eff[t, :, o]
    m = jnp.einsum('vc,tcn->tvn', table, w_eff).reshape(T * V, NC)

    dec_w_t = params["dec_w"].T                                  # (NC, n_classes)
    dec_b = params["dec_b"]
    n_classes = int(dec_b.shape[0])

    def align8(r):
        return (r + 7) // 8 * 8

    TV = T * V
    row_cbias = align8(TV)
    row_decw = align8(row_cbias + 1)
    row_decb = align8(row_decw + NC)
    n_rows = align8(row_decb + 1)

    # Single packed parameter buffer (one DMA instead of many tiny ones),
    # with every section starting on an 8-row (sublane) boundary.
    packed = jnp.zeros((n_rows, NC), jnp.float32)
    packed = packed.at[0:TV, :].set(m)
    packed = packed.at[row_cbias, :].set(conv_bias)
    packed = packed.at[row_decw:row_decw + NC, 0:n_classes].set(dec_w_t)
    packed = packed.at[row_decb, 0:n_classes].set(dec_b)

    layout = dict(T=T, V=V, NC=NC, n_classes=n_classes,
                  row_cbias=row_cbias, row_decw=row_decw, row_decb=row_decb)
    return packed, layout


def make_forward(layout):
    kern = functools.partial(textcnn_kernel, **layout)
    vmem = pl.BlockSpec(memory_space=pltpu.MemorySpace.VMEM)

    @jax.jit
    def forward(inputs, packed):
        B = inputs.shape[0]
        # Tiny problem -> gridless, whole arrays resident in VMEM (~90 KB total).
        # TODO(synk): at realistic batch sizes add grid=(B//TB,) with
        # dimension_semantics=("parallel",) (v7x megacore) and bf16 MXU operands.
        return pl.pallas_call(
            kern,
            out_shape=jax.ShapeDtypeStruct((B, layout["n_classes"]), jnp.float32),
            in_specs=[vmem, vmem],
            out_specs=vmem,
        )(inputs.astype(jnp.int32), packed)

    return forward


def reference_forward(inputs, params):
    """Pure-JAX reference mirroring the PyTorch forward (eval mode)."""
    e = jnp.take(params["emb"], inputs, axis=0)
    ce = jnp.take(params["const_emb"], inputs, axis=0)
    x = jnp.concatenate([e, ce], axis=-1)                        # (B, T, C)
    B, T, C = x.shape
    encs = []
    for w, b in params["convs"]:                                 # w: (c_out, C, k)
        c_out, _, k = w.shape
        l_out = T - k + 1
        conv = jnp.zeros((B, l_out, c_out), jnp.float32)
        for j in range(k):
            conv = conv + jnp.einsum('blc,oc->blo', x[:, j:j + l_out, :], w[:, :, j])
        conv = conv + b[None, None, :]
        pooled = jnp.mean(conv, axis=1)                          # AdaptiveAvgPool1d(1)
        encs.append(jnp.maximum(pooled, 0.0))                    # ReLU after pool
    enc = jnp.concatenate(encs, axis=-1)
    return enc @ params["dec_w"].T + params["dec_b"]


if __name__ == "__main__":
    vocab_size = 50
    embed_size = 16
    kernel_sizes = (3, 4, 5)
    num_channels = (8, 8, 8)
    B, T = 2, 16

    key = jax.random.PRNGKey(0)
    pkey, ikey = jax.random.split(key)
    params = make_params(pkey, vocab_size, embed_size, kernel_sizes, num_channels)
    inputs = jax.random.randint(ikey, (B, T), 0, vocab_size, dtype=jnp.int32)

    packed, layout = prepare_params(params, T)
    forward = make_forward(layout)

    out = jax.block_until_ready(forward(inputs, packed))

    ref = reference_forward(inputs, params)
    assert out.shape == (B, 2)
    assert jnp.allclose(out, ref, rtol=1e-4, atol=1e-4), (out, ref)
    print("KERNEL_OK")
</pallas_src>

<mosaic_0001>
module attributes {stable_mosaic.version = 11 : i64} {
  func.func @textcnn_kernel(%arg0: memref<2x16xi32, #tpu.memory_space<vmem>>, %arg1: memref<840x24xf32, #tpu.memory_space<vmem>>, %arg2: memref<2x2xf32, #tpu.memory_space<vmem>>) attributes {dimension_semantics = [], scalar_prefetch = 0 : i64, scratch_operands = 0 : i64, tpu.core_type = #tpu.core_type<tc>} {
    %c0 = arith.constant 0 : index
    %c0_0 = arith.constant 0 : index
    %0 = vector.load %arg0[%c0, %c0_0] : memref<2x16xi32, #tpu.memory_space<vmem>>, vector<2x16xi32>
    %1 = tpu.iota {dimensions = array<i32: 1>} : vector<2x800xi32>
    %2 = vector.extract_strided_slice %0 {offsets = [0, 0], sizes = [2, 1], strides = [1, 1]} : vector<2x16xi32> to vector<2x1xi32>
    %3 = vector.broadcast %2 : vector<2x1xi32> to vector<2x800xi32>
    %4 = arith.cmpi eq, %1, %3 : vector<2x800xi32>
    %5 = arith.extui %4 : vector<2x800xi1> to vector<2x800xi32>
    %6 = arith.sitofp %5 : vector<2x800xi32> to vector<2x800xf32>
    %7 = vector.extract_strided_slice %0 {offsets = [0, 1], sizes = [2, 1], strides = [1, 1]} : vector<2x16xi32> to vector<2x1xi32>
    %c50_i32 = arith.constant 50 : i32
    %8 = vector.broadcast %c50_i32 : i32 to vector<2x1xi32>
    %9 = arith.addi %7, %8 : vector<2x1xi32>
    %10 = vector.broadcast %9 : vector<2x1xi32> to vector<2x800xi32>
    %11 = arith.cmpi eq, %1, %10 : vector<2x800xi32>
    %12 = arith.extui %11 : vector<2x800xi1> to vector<2x800xi32>
    %13 = arith.sitofp %12 : vector<2x800xi32> to vector<2x800xf32>
    %14 = arith.addf %6, %13 : vector<2x800xf32>
    %15 = vector.extract_strided_slice %0 {offsets = [0, 2], sizes = [2, 1], strides = [1, 1]} : vector<2x16xi32> to vector<2x1xi32>
    %c100_i32 = arith.constant 100 : i32
    %16 = vector.broadcast %c100_i32 : i32 to vector<2x1xi32>
    %17 = arith.addi %15, %16 : vector<2x1xi32>
    %18 = vector.broadcast %17 : vector<2x1xi32> to vector<2x800xi32>
    %19 = arith.cmpi eq, %1, %18 : vector<2x800xi32>
    %20 = arith.extui %19 : vector<2x800xi1> to vector<2x800xi32>
    %21 = arith.sitofp %20 : vector<2x800xi32> to vector<2x800xf32>
    %22 = arith.addf %14, %21 : vector<2x800xf32>
    %23 = vector.extract_strided_slice %0 {offsets = [0, 3], sizes = [2, 1], strides = [1, 1]} : vector<2x16xi32> to vector<2x1xi32>
    %c150_i32 = arith.constant 150 : i32
    %24 = vector.broadcast %c150_i32 : i32 to vector<2x1xi32>
    %25 = arith.addi %23, %24 : vector<2x1xi32>
    %26 = vector.broadcast %25 : vector<2x1xi32> to vector<2x800xi32>
    %27 = arith.cmpi eq, %1, %26 : vector<2x800xi32>
    %28 = arith.extui %27 : vector<2x800xi1> to vector<2x800xi32>
    %29 = arith.sitofp %28 : vector<2x800xi32> to vector<2x800xf32>
    %30 = arith.addf %22, %29 : vector<2x800xf32>
    %31 = vector.extract_strided_slice %0 {offsets = [0, 4], sizes = [2, 1], strides = [1, 1]} : vector<2x16xi32> to vector<2x1xi32>
    %c200_i32 = arith.constant 200 : i32
    %32 = vector.broadcast %c200_i32 : i32 to vector<2x1xi32>
    %33 = arith.addi %31, %32 : vector<2x1xi32>
    %34 = vector.broadcast %33 : vector<2x1xi32> to vector<2x800xi32>
    %35 = arith.cmpi eq, %1, %34 : vector<2x800xi32>
    %36 = arith.extui %35 : vector<2x800xi1> to vector<2x800xi32>
    %37 = arith.sitofp %36 : vector<2x800xi32> to vector<2x800xf32>
    %38 = arith.addf %30, %37 : vector<2x800xf32>
    %39 = vector.extract_strided_slice %0 {offsets = [0, 5], sizes = [2, 1], strides = [1, 1]} : vector<2x16xi32> to vector<2x1xi32>
    %c250_i32 = arith.constant 250 : i32
    %40 = vector.broadcast %c250_i32 : i32 to vector<2x1xi32>
    %41 = arith.addi %39, %40 : vector<2x1xi32>
    %42 = vector.broadcast %41 : vector<2x1xi32> to vector<2x800xi32>
    %43 = arith.cmpi eq, %1, %42 : vector<2x800xi32>
    %44 = arith.extui %43 : vector<2x800xi1> to vector<2x800xi32>
    %45 = arith.sitofp %44 : vector<2x800xi32> to vector<2x800xf32>
    %46 = arith.addf %38, %45 : vector<2x800xf32>
    %47 = vector.extract_strided_slice %0 {offsets = [0, 6], sizes = [2, 1], strides = [1, 1]} : vector<2x16xi32> to vector<2x1xi32>
    %c300_i32 = arith.constant 300 : i32
    %48 = vector.broadcast %c300_i32 : i32 to vector<2x1xi32>
    %49 = arith.addi %47, %48 : vector<2x1xi32>
    %50 = vector.broadcast %49 : vector<2x1xi32> to vector<2x800xi32>
    %51 = arith.cmpi eq, %1, %50 : vector<2x800xi32>
    %52 = arith.extui %51 : vector<2x800xi1> to vector<2x800xi32>
    %53 = arith.sitofp %52 : vector<2x800xi32> to vector<2x800xf32>
    %54 = arith.addf %46, %53 : vector<2x800xf32>
    %55 = vector.extract_strided_slice %0 {offsets = [0, 7], sizes = [2, 1], strides = [1, 1]} : vector<2x16xi32> to vector<2x1xi32>
    %c350_i32 = arith.constant 350 : i32
    %56 = vector.broadcast %c350_i32 : i32 to vector<2x1xi32>
    %57 = arith.addi %55, %56 : vector<2x1xi32>
    %58 = vector.broadcast %57 : vector<2x1xi32> to vector<2x800xi32>
    %59 = arith.cmpi eq, %1, %58 : vector<2x800xi32>
    %60 = arith.extui %59 : vector<2x800xi1> to vector<2x800xi32>
    %61 = arith.sitofp %60 : vector<2x800xi32> to vector<2x800xf32>
    %62 = arith.addf %54, %61 : vector<2x800xf32>
    %63 = vector.extract_strided_slice %0 {offsets = [0, 8], sizes = [2, 1], strides = [1, 1]} : vector<2x16xi32> to vector<2x1xi32>
    %c400_i32 = arith.constant 400 : i32
    %64 = vector.broadcast %c400_i32 : i32 to vector<2x1xi32>
    %65 = arith.addi %63, %64 : vector<2x1xi32>
    %66 = vector.broadcast %65 : vector<2x1xi32> to vector<2x800xi32>
    %67 = arith.cmpi eq, %1, %66 : vector<2x800xi32>
    %68 = arith.extui %67 : vector<2x800xi1> to vector<2x800xi32>
    %69 = arith.sitofp %68 : vector<2x800xi32> to vector<2x800xf32>
    %70 = arith.addf %62, %69 : vector<2x800xf32>
    %71 = vector.extract_strided_slice %0 {offsets = [0, 9], sizes = [2, 1], strides = [1, 1]} : vector<2x16xi32> to vector<2x1xi32>
    %c450_i32 = arith.constant 450 : i32
    %72 = vector.broadcast %c450_i32 : i32 to vector<2x1xi32>
    %73 = arith.addi %71, %72 : vector<2x1xi32>
    %74 = vector.broadcast %73 : vector<2x1xi32> to vector<2x800xi32>
    %75 = arith.cmpi eq, %1, %74 : vector<2x800xi32>
    %76 = arith.extui %75 : vector<2x800xi1> to vector<2x800xi32>
    %77 = arith.sitofp %76 : vector<2x800xi32> to vector<2x800xf32>
    %78 = arith.addf %70, %77 : vector<2x800xf32>
    %79 = vector.extract_strided_slice %0 {offsets = [0, 10], sizes = [2, 1], strides = [1, 1]} : vector<2x16xi32> to vector<2x1xi32>
    %c500_i32 = arith.constant 500 : i32
    %80 = vector.broadcast %c500_i32 : i32 to vector<2x1xi32>
    %81 = arith.addi %79, %80 : vector<2x1xi32>
    %82 = vector.broadcast %81 : vector<2x1xi32> to vector<2x800xi32>
    %83 = arith.cmpi eq, %1, %82 : vector<2x800xi32>
    %84 = arith.extui %83 : vector<2x800xi1> to vector<2x800xi32>
    %85 = arith.sitofp %84 : vector<2x800xi32> to vector<2x800xf32>
    %86 = arith.addf %78, %85 : vector<2x800xf32>
    %87 = vector.extract_strided_slice %0 {offsets = [0, 11], sizes = [2, 1], strides = [1, 1]} : vector<2x16xi32> to vector<2x1xi32>
    %c550_i32 = arith.constant 550 : i32
    %88 = vector.broadcast %c550_i32 : i32 to vector<2x1xi32>
    %89 = arith.addi %87, %88 : vector<2x1xi32>
    %90 = vector.broadcast %89 : vector<2x1xi32> to vector<2x800xi32>
    %91 = arith.cmpi eq, %1, %90 : vector<2x800xi32>
    %92 = arith.extui %91 : vector<2x800xi1> to vector<2x800xi32>
    %93 = arith.sitofp %92 : vector<2x800xi32> to vector<2x800xf32>
    %94 = arith.addf %86, %93 : vector<2x800xf32>
    %95 = vector.extract_strided_slice %0 {offsets = [0, 12], sizes = [2, 1], strides = [1, 1]} : vector<2x16xi32> to vector<2x1xi32>
    %c600_i32 = arith.constant 600 : i32
    %96 = vector.broadcast %c600_i32 : i32 to vector<2x1xi32>
    %97 = arith.addi %95, %96 : vector<2x1xi32>
    %98 = vector.broadcast %97 : vector<2x1xi32> to vector<2x800xi32>
    %99 = arith.cmpi eq, %1, %98 : vector<2x800xi32>
    %100 = arith.extui %99 : vector<2x800xi1> to vector<2x800xi32>
    %101 = arith.sitofp %100 : vector<2x800xi32> to vector<2x800xf32>
    %102 = arith.addf %94, %101 : vector<2x800xf32>
    %103 = vector.extract_strided_slice %0 {offsets = [0, 13], sizes = [2, 1], strides = [1, 1]} : vector<2x16xi32> to vector<2x1xi32>
    %c650_i32 = arith.constant 650 : i32
    %104 = vector.broadcast %c650_i32 : i32 to vector<2x1xi32>
    %105 = arith.addi %103, %104 : vector<2x1xi32>
    %106 = vector.broadcast %105 : vector<2x1xi32> to vector<2x800xi32>
    %107 = arith.cmpi eq, %1, %106 : vector<2x800xi32>
    %108 = arith.extui %107 : vector<2x800xi1> to vector<2x800xi32>
    %109 = arith.sitofp %108 : vector<2x800xi32> to vector<2x800xf32>
    %110 = arith.addf %102, %109 : vector<2x800xf32>
    %111 = vector.extract_strided_slice %0 {offsets = [0, 14], sizes = [2, 1], strides = [1, 1]} : vector<2x16xi32> to vector<2x1xi32>
    %c700_i32 = arith.constant 700 : i32
    %112 = vector.broadcast %c700_i32 : i32 to vector<2x1xi32>
    %113 = arith.addi %111, %112 : vector<2x1xi32>
    %114 = vector.broadcast %113 : vector<2x1xi32> to vector<2x800xi32>
    %115 = arith.cmpi eq, %1, %114 : vector<2x800xi32>
    %116 = arith.extui %115 : vector<2x800xi1> to vector<2x800xi32>
    %117 = arith.sitofp %116 : vector<2x800xi32> to vector<2x800xf32>
    %118 = arith.addf %110, %117 : vector<2x800xf32>
    %119 = vector.extract_strided_slice %0 {offsets = [0, 15], sizes = [2, 1], strides = [1, 1]} : vector<2x16xi32> to vector<2x1xi32>
    %c750_i32 = arith.constant 750 : i32
    %120 = vector.broadcast %c750_i32 : i32 to vector<2x1xi32>
    %121 = arith.addi %119, %120 : vector<2x1xi32>
    %122 = vector.broadcast %121 : vector<2x1xi32> to vector<2x800xi32>
    %123 = arith.cmpi eq, %1, %122 : vector<2x800xi32>
    %124 = arith.extui %123 : vector<2x800xi1> to vector<2x800xi32>
    %125 = arith.sitofp %124 : vector<2x800xi32> to vector<2x800xf32>
    %126 = arith.addf %118, %125 : vector<2x800xf32>
    %c0_1 = arith.constant 0 : index
    %c0_2 = arith.constant 0 : index
    %127 = vector.load %arg1[%c0_1, %c0_2] : memref<840x24xf32, #tpu.memory_space<vmem>>, vector<800x24xf32>
    %cst = arith.constant dense<0.000000e+00> : vector<2x24xf32>
    %128 = tpu.matmul %126, %127, %cst {dimension_numbers = #tpu.dot_dimension_numbers<[1], [0], [0], [1], [0, 0, 1, 1], [], []>} : vector<2x800xf32>, vector<800x24xf32>, vector<2x24xf32> -> vector<2x24xf32>
    %c800 = arith.constant 800 : index
    %c0_3 = arith.constant 0 : index
    %129 = vector.load %arg1[%c800, %c0_3] : memref<840x24xf32, #tpu.memory_space<vmem>>, vector<1x24xf32>
    %130 = vector.broadcast %129 : vector<1x24xf32> to vector<2x24xf32>
    %131 = arith.addf %128, %130 : vector<2x24xf32>
    %cst_4 = arith.constant 0.000000e+00 : f32
    %132 = vector.broadcast %cst_4 : f32 to vector<2x24xf32>
    %133 = arith.maximumf %131, %132 : vector<2x24xf32>
    %c808 = arith.constant 808 : index
    %c0_5 = arith.constant 0 : index
    %134 = vector.load %arg1[%c808, %c0_5] : memref<840x24xf32, #tpu.memory_space<vmem>>, vector<24x2xf32>
    %c832 = arith.constant 832 : index
    %c0_6 = arith.constant 0 : index
    %135 = vector.load %arg1[%c832, %c0_6] : memref<840x24xf32, #tpu.memory_space<vmem>>, vector<1x2xf32>
    %cst_7 = arith.constant dense<0.000000e+00> : vector<2x2xf32>
    %136 = tpu.matmul %133, %134, %cst_7 {dimension_numbers = #tpu.dot_dimension_numbers<[1], [0], [0], [1], [0, 0, 1, 1], [], []>} : vector<2x24xf32>, vector<24x2xf32>, vector<2x2xf32> -> vector<2x2xf32>
    %137 = vector.broadcast %135 : vector<1x2xf32> to vector<2x2xf32>
    %138 = arith.addf %136, %137 : vector<2x2xf32>
    %c0_8 = arith.constant 0 : index
    %c0_9 = arith.constant 0 : index
    %139 = vector.load %arg2[%c0_8, %c0_9] : memref<2x2xf32, #tpu.memory_space<vmem>>, vector<2x2xf32>
    tpu.vector_store %arg2[%c0_8, %c0_9], %138 {strides = array<i32>} : memref<2x2xf32, #tpu.memory_space<vmem>>, vector<2x2xf32>,
    return
  }
}

</mosaic_0001>

<llo_original>
// kernel: forward.1
$region0: #{forward.1}
  #allocation0 [shape = 'u32[]', space=smem, size = 0x4, offset = 0x4, fixed_abs, tag = 'smem constant byte address 0x4 - core index']
  #allocation1 [shape = 'u32[144,128]{1,0:T(1,128)}', space=vmem, size = 0x12000, scoped, tag = 'internal scratch']
  %s0 = inlined_call_operand.vmem [shape: s32[2,16], index: 0, kind: input, shape index: {}]
  %s1 = inlined_call_operand.vmem [shape: f32[840,24], index: 1, kind: input, shape index: {}]
  %s2 = inlined_call_operand.hbm [shape: f32[2,2], index: 2, kind: output, shape index: {}]
  %s3 = sld [smem:[#allocation0]]
  $region18: #{forward.1} parent=0
    _
  %s5 = ssub.s32 1, %s3
  %s6 = scalar_select 0, %s5, %s3
  $region1: #{forward.1} parent=0
    #allocation2 [shape = 'u8[1024]{0}', space=vmem, size = 0x400, scoped, tag = 'output window, operand 0, single buffered']
    #allocation3 [shape = 's32[1]{0}', space=sflag, size = 0x4, scoped, tag = 'scoped memory for forward.1']
    %7 = vsyncpa [#allocation3], 0
    // Predicated region
    $region2: #{forward.1} parent=1 // pred_check
      _
    $region3: #{forward.1} parent=1 // pred_check_branch
      %9 = sbr.rel (0) target = $region5
    $region4: #{forward.1} parent=1 // pred_region
      _
    $region5: #{forward.1} parent=1 // pred_fallthru
      _
    // Predicated region
    $region6: #{forward.1} parent=1 // pred_check
      _
    $region7: #{forward.1} parent=1 // pred_check_branch
      %11 = sbr.rel (0) target = $region9
    $region8: #{forward.1} parent=1 // pred_region
      _
    $region9: #{forward.1} parent=1 // pred_fallthru
      _
    %v12 = vld [vmem:[%s0] sm:$0x3]
    %v13 = vlaneseq
    %v14 = vand.u32 %v13, 127
    %v15 = vadd.s32 %v14, 128
    %v16 = vadd.s32 %v14, 256
    %v17 = vadd.s32 %v14, 384
    %v18 = vadd.s32 %v14, 512
    %v19 = vadd.s32 %v14, 640
    %v20 = vadd.s32 %v14, 768
    %21 = vset.pattern.permute.xlu0 0
    %22 = vperm.xlu0 %21, %v12
    %v23 = vpop.permute.xlu0 %22
    %vm24 = vcmp.eq.s32.totalorder %v14, %v23
    %vm25 = vcmp.eq.s32.totalorder %v15, %v23
    %vm26 = vcmp.eq.s32.totalorder %v16, %v23
    %vm27 = vcmp.eq.s32.totalorder %v17, %v23
    %vm28 = vcmp.eq.s32.totalorder %v18, %v23
    %vm29 = vcmp.eq.s32.totalorder %v19, %v23
    %vm30 = vcmp.eq.s32.totalorder %v20, %v23
    %v31 = vsel %vm24, 1, 0
    %v32 = vsel %vm25, 1, 0
    %v33 = vsel %vm26, 1, 0
    %v34 = vsel %vm27, 1, 0
    %v35 = vsel %vm28, 1, 0
    %v36 = vsel %vm29, 1, 0
    %v37 = vsel %vm30, 1, 0
    %v38 = vcvt.s32.f32 %v31
    %v39 = vcvt.s32.f32 %v32
    %v40 = vcvt.s32.f32 %v33
    %v41 = vcvt.s32.f32 %v34
    %v42 = vcvt.s32.f32 %v35
    %v43 = vcvt.s32.f32 %v36
    %v44 = vcvt.s32.f32 %v37
    %v45 = vadd.s32 %v12, 50
    %46 = vset.pattern.permute.xlu0 1
    %47 = vperm.xlu0 %46, %v45
    %v48 = vpop.permute.xlu0 %47
    %vm49 = vcmp.eq.s32.totalorder %v14, %v48
    %vm50 = vcmp.eq.s32.totalorder %v15, %v48
    %vm51 = vcmp.eq.s32.totalorder %v16, %v48
    %vm52 = vcmp.eq.s32.totalorder %v17, %v48
    %vm53 = vcmp.eq.s32.totalorder %v18, %v48
    %vm54 = vcmp.eq.s32.totalorder %v19, %v48
    %vm55 = vcmp.eq.s32.totalorder %v20, %v48
    %v56 = vsel %vm49, 1, 0
    %v57 = vsel %vm50, 1, 0
    %v58 = vsel %vm51, 1, 0
    %v59 = vsel %vm52, 1, 0
    %v60 = vsel %vm53, 1, 0
    %v61 = vsel %vm54, 1, 0
    %v62 = vsel %vm55, 1, 0
    %v63 = vcvt.s32.f32 %v56
    %v64 = vcvt.s32.f32 %v57
    %v65 = vcvt.s32.f32 %v58
    %v66 = vcvt.s32.f32 %v59
    %v67 = vcvt.s32.f32 %v60
    %v68 = vcvt.s32.f32 %v61
    %v69 = vcvt.s32.f32 %v62
    %v70 = vadd.f32 %v38, %v63
    %v71 = vadd.f32 %v39, %v64
    %v72 = vadd.f32 %v40, %v65
    %v73 = vadd.f32 %v41, %v66
    %v74 = vadd.f32 %v42, %v67
    %v75 = vadd.f32 %v43, %v68
    %v76 = vadd.f32 %v44, %v69
    %v77 = vadd.s32 %v12, 100
    %78 = vset.pattern.permute.xlu0 2
    %79 = vperm.xlu0 %78, %v77
    %v80 = vpop.permute.xlu0 %79
    %vm81 = vcmp.eq.s32.totalorder %v14, %v80
    %vm82 = vcmp.eq.s32.totalorder %v15, %v80
    %vm83 = vcmp.eq.s32.totalorder %v16, %v80
    %vm84 = vcmp.eq.s32.totalorder %v17, %v80
    %vm85 = vcmp.eq.s32.totalorder %v18, %v80
    %vm86 = vcmp.eq.s32.totalorder %v19, %v80
    %vm87 = vcmp.eq.s32.totalorder %v20, %v80
    %v88 = vsel %vm81, 1, 0
    %v89 = vsel %vm82, 1, 0
    %v90 = vsel %vm83, 1, 0
    %v91 = vsel %vm84, 1, 0
    %v92 = vsel %vm85, 1, 0
    %v93 = vsel %vm86, 1, 0
    %v94 = vsel %vm87, 1, 0
    %v95 = vcvt.s32.f32 %v88
    %v96 = vcvt.s32.f32 %v89
    %v97 = vcvt.s32.f32 %v90
    %v98 = vcvt.s32.f32 %v91
    %v99 = vcvt.s32.f32 %v92
    %v100 = vcvt.s32.f32 %v93
    %v101 = vcvt.s32.f32 %v94
    %v102 = vadd.f32 %v70, %v95
    %v103 = vadd.f32 %v71, %v96
    %v104 = vadd.f32 %v72, %v97
    %v105 = vadd.f32 %v73, %v98
    %v106 = vadd.f32 %v74, %v99
    %v107 = vadd.f32 %v75, %v100
    %v108 = vadd.f32 %v76, %v101
    %v109 = vadd.s32 %v12, 150
    %110 = vset.pattern.permute.xlu0 3
    %111 = vperm.xlu0 %110, %v109
    %v112 = vpop.permute.xlu0 %111
    %vm113 = vcmp.eq.s32.totalorder %v14, %v112
    %vm114 = vcmp.eq.s32.totalorder %v15, %v112
    %vm115 = vcmp.eq.s32.totalorder %v16, %v112
    %vm116 = vcmp.eq.s32.totalorder %v17, %v112
    %vm117 = vcmp.eq.s32.totalorder %v18, %v112
    %vm118 = vcmp.eq.s32.totalorder %v19, %v112
    %vm119 = vcmp.eq.s32.totalorder %v20, %v112
    %v120 = vsel %vm113, 1, 0
    %v121 = vsel %vm114, 1, 0
    %v122 = vsel %vm115, 1, 0
    %v123 = vsel %vm116, 1, 0
    %v124 = vsel %vm117, 1, 0
    %v125 = vsel %vm118, 1, 0
    %v126 = vsel %vm119, 1, 0
    %v127 = vcvt.s32.f32 %v120
    %v128 = vcvt.s32.f32 %v121
    %v129 = vcvt.s32.f32 %v122
    %v130 = vcvt.s32.f32 %v123
    %v131 = vcvt.s32.f32 %v124
    %v132 = vcvt.s32.f32 %v125
    %v133 = vcvt.s32.f32 %v126
    %v134 = vadd.f32 %v102, %v127
    %v135 = vadd.f32 %v103, %v128
    %v136 = vadd.f32 %v104, %v129
    %v137 = vadd.f32 %v105, %v130
    %v138 = vadd.f32 %v106, %v131
    %v139 = vadd.f32 %v107, %v132
    %v140 = vadd.f32 %v108, %v133
    %v141 = vadd.s32 %v12, 200
    %142 = vset.pattern.permute.xlu0 4
    %143 = vperm.xlu0 %142, %v141
    %v144 = vpop.permute.xlu0 %143
    %vm145 = vcmp.eq.s32.totalorder %v14, %v144
    %vm146 = vcmp.eq.s32.totalorder %v15, %v144
    %vm147 = vcmp.eq.s32.totalorder %v16, %v144
    %vm148 = vcmp.eq.s32.totalorder %v17, %v144
    %vm149 = vcmp.eq.s32.totalorder %v18, %v144
    %vm150 = vcmp.eq.s32.totalorder %v19, %v144
    %vm151 = vcmp.eq.s32.totalorder %v20, %v144
    %v152 = vsel %vm145, 1, 0
    %v153 = vsel %vm146, 1, 0
    %v154 = vsel %vm147, 1, 0
    %v155 = vsel %vm148, 1, 0
    %v156 = vsel %vm149, 1, 0
    %v157 = vsel %vm150, 1, 0
    %v158 = vsel %vm151, 1, 0
    %v159 = vcvt.s32.f32 %v152
    %v160 = vcvt.s32.f32 %v153
    %v161 = vcvt.s32.f32 %v154
    %v162 = vcvt.s32.f32 %v155
    %v163 = vcvt.s32.f32 %v156
    %v164 = vcvt.s32.f32 %v157
    %v165 = vcvt.s32.f32 %v158
    %v166 = vadd.f32 %v134, %v159
    %v167 = vadd.f32 %v135, %v160
    %v168 = vadd.f32 %v136, %v161
    %v169 = vadd.f32 %v137, %v162
    %v170 = vadd.f32 %v138, %v163
    %v171 = vadd.f32 %v139, %v164
    %v172 = vadd.f32 %v140, %v165
    %v173 = vadd.s32 %v12, 250
    %174 = vset.pattern.permute.xlu0 5
    %175 = vperm.xlu0 %174, %v173
    %v176 = vpop.permute.xlu0 %175
    %vm177 = vcmp.eq.s32.totalorder %v14, %v176
    %vm178 = vcmp.eq.s32.totalorder %v15, %v176
    %vm179 = vcmp.eq.s32.totalorder %v16, %v176
    %vm180 = vcmp.eq.s32.totalorder %v17, %v176
    %vm181 = vcmp.eq.s32.totalorder %v18, %v176
    %vm182 = vcmp.eq.s32.totalorder %v19, %v176
    %vm183 = vcmp.eq.s32.totalorder %v20, %v176
    %v184 = vsel %vm177, 1, 0
    %v185 = vsel %vm178, 1, 0
    %v186 = vsel %vm179, 1, 0
    %v187 = vsel %vm180, 1, 0
    %v188 = vsel %vm181, 1, 0
    %v189 = vsel %vm182, 1, 0
    %v190 = vsel %vm183, 1, 0
    %v191 = vcvt.s32.f32 %v184
    %v192 = vcvt.s32.f32 %v185
    %v193 = vcvt.s32.f32 %v186
    %v194 = vcvt.s32.f32 %v187
    %v195 = vcvt.s32.f32 %v188
    %v196 = vcvt.s32.f32 %v189
    %v197 = vcvt.s32.f32 %v190
    %v198 = vadd.f32 %v166, %v191
    %v199 = vadd.f32 %v167, %v192
    %v200 = vadd.f32 %v168, %v193
    %v201 = vadd.f32 %v169, %v194
    %v202 = vadd.f32 %v170, %v195
    %v203 = vadd.f32 %v171, %v196
    %v204 = vadd.f32 %v172, %v197
    %v205 = vadd.s32 %v12, 300
    %206 = vset.pattern.permute.xlu0 6
    %207 = vperm.xlu0 %206, %v205
    %v208 = vpop.permute.xlu0 %207
    %vm209 = vcmp.eq.s32.totalorder %v14, %v208
    %vm210 = vcmp.eq.s32.totalorder %v15, %v208
    %vm211 = vcmp.eq.s32.totalorder %v16, %v208
    %vm212 = vcmp.eq.s32.totalorder %v17, %v208
    %vm213 = vcmp.eq.s32.totalorder %v18, %v208
    %vm214 = vcmp.eq.s32.totalorder %v19, %v208
    %vm215 = vcmp.eq.s32.totalorder %v20, %v208
    %v216 = vsel %vm209, 1, 0
    %v217 = vsel %vm210, 1, 0
    %v218 = vsel %vm211, 1, 0
    %v219 = vsel %vm212, 1, 0
    %v220 = vsel %vm213, 1, 0
    %v221 = vsel %vm214, 1, 0
    %v222 = vsel %vm215, 1, 0
    %v223 = vcvt.s32.f32 %v216
    %v224 = vcvt.s32.f32 %v217
    %v225 = vcvt.s32.f32 %v218
    %v226 = vcvt.s32.f32 %v219
    %v227 = vcvt.s32.f32 %v220
    %v228 = vcvt.s32.f32 %v221
    %v229 = vcvt.s32.f32 %v222
    %v230 = vadd.f32 %v198, %v223
    %v231 = vadd.f32 %v199, %v224
    %v232 = vadd.f32 %v200, %v225
    %v233 = vadd.f32 %v201, %v226
    %v234 = vadd.f32 %v202, %v227
    %v235 = vadd.f32 %v203, %v228
    %v236 = vadd.f32 %v204, %v229
    %v237 = vadd.s32 %v12, 350
    %238 = vset.pattern.permute.xlu0 7
    %239 = vperm.xlu0 %238, %v237
    %v240 = vpop.permute.xlu0 %239
    %vm241 = vcmp.eq.s32.totalorder %v14, %v240
    %vm242 = vcmp.eq.s32.totalorder %v15, %v240
    %vm243 = vcmp.eq.s32.totalorder %v16, %v240
    %vm244 = vcmp.eq.s32.totalorder %v17, %v240
    %vm245 = vcmp.eq.s32.totalorder %v18, %v240
    %vm246 = vcmp.eq.s32.totalorder %v19, %v240
    %vm247 = vcmp.eq.s32.totalorder %v20, %v240
    %v248 = vsel %vm241, 1, 0
    %v249 = vsel %vm242, 1, 0
    %v250 = vsel %vm243, 1, 0
    %v251 = vsel %vm244, 1, 0
    %v252 = vsel %vm245, 1, 0
    %v253 = vsel %vm246, 1, 0
    %v254 = vsel %vm247, 1, 0
    %v255 = vcvt.s32.f32 %v248
    %v256 = vcvt.s32.f32 %v249
    %v257 = vcvt.s32.f32 %v250
    %v258 = vcvt.s32.f32 %v251
    %v259 = vcvt.s32.f32 %v252
    %v260 = vcvt.s32.f32 %v253
    %v261 = vcvt.s32.f32 %v254
    %v262 = vadd.f32 %v230, %v255
    %v263 = vadd.f32 %v231, %v256
    %v264 = vadd.f32 %v232, %v257
    %v265 = vadd.f32 %v233, %v258
    %v266 = vadd.f32 %v234, %v259
    %v267 = vadd.f32 %v235, %v260
    %v268 = vadd.f32 %v236, %v261
    %v269 = vadd.s32 %v12, 400
    %270 = vset.pattern.permute.xlu0 8
    %271 = vperm.xlu0 %270, %v269
    %v272 = vpop.permute.xlu0 %271
    %vm273 = vcmp.eq.s32.totalorder %v14, %v272
    %vm274 = vcmp.eq.s32.totalorder %v15, %v272
    %vm275 = vcmp.eq.s32.totalorder %v16, %v272
    %vm276 = vcmp.eq.s32.totalorder %v17, %v272
    %vm277 = vcmp.eq.s32.totalorder %v18, %v272
    %vm278 = vcmp.eq.s32.totalorder %v19, %v272
    %vm279 = vcmp.eq.s32.totalorder %v20, %v272
    %v280 = vsel %vm273, 1, 0
    %v281 = vsel %vm274, 1, 0
    %v282 = vsel %vm275, 1, 0
    %v283 = vsel %vm276, 1, 0
    %v284 = vsel %vm277, 1, 0
    %v285 = vsel %vm278, 1, 0
    %v286 = vsel %vm279, 1, 0
    %v287 = vcvt.s32.f32 %v280
    %v288 = vcvt.s32.f32 %v281
    %v289 = vcvt.s32.f32 %v282
    %v290 = vcvt.s32.f32 %v283
    %v291 = vcvt.s32.f32 %v284
    %v292 = vcvt.s32.f32 %v285
    %v293 = vcvt.s32.f32 %v286
    %v294 = vadd.f32 %v262, %v287
    %v295 = vadd.f32 %v263, %v288
    %v296 = vadd.f32 %v264, %v289
    %v297 = vadd.f32 %v265, %v290
    %v298 = vadd.f32 %v266, %v291
    %v299 = vadd.f32 %v267, %v292
    %v300 = vadd.f32 %v268, %v293
    %v301 = vadd.s32 %v12, 450
    %302 = vset.pattern.permute.xlu0 9
    %303 = vperm.xlu0 %302, %v301
    %v304 = vpop.permute.xlu0 %303
    %vm305 = vcmp.eq.s32.totalorder %v14, %v304
    %vm306 = vcmp.eq.s32.totalorder %v15, %v304
    %vm307 = vcmp.eq.s32.totalorder %v16, %v304
    %vm308 = vcmp.eq.s32.totalorder %v17, %v304
    %vm309 = vcmp.eq.s32.totalorder %v18, %v304
    %vm310 = vcmp.eq.s32.totalorder %v19, %v304
    %vm311 = vcmp.eq.s32.totalorder %v20, %v304
    %v312 = vsel %vm305, 1, 0
    %v313 = vsel %vm306, 1, 0
    %v314 = vsel %vm307, 1, 0
    %v315 = vsel %vm308, 1, 0
    %v316 = vsel %vm309, 1, 0
    %v317 = vsel %vm310, 1, 0
    %v318 = vsel %vm311, 1, 0
    %v319 = vcvt.s32.f32 %v312
    %v320 = vcvt.s32.f32 %v313
    %v321 = vcvt.s32.f32 %v314
    %v322 = vcvt.s32.f32 %v315
    %v323 = vcvt.s32.f32 %v316
    %v324 = vcvt.s32.f32 %v317
    %v325 = vcvt.s32.f32 %v318
    %v326 = vadd.f32 %v294, %v319
    %v327 = vadd.f32 %v295, %v320
    %v328 = vadd.f32 %v296, %v321
    %v329 = vadd.f32 %v297, %v322
    %v330 = vadd.f32 %v298, %v323
    %v331 = vadd.f32 %v299, %v324
    %v332 = vadd.f32 %v300, %v325
    %v333 = vadd.s32 %v12, 500
    %334 = vset.pattern.permute.xlu0 10
    %335 = vperm.xlu0 %334, %v333
    %v336 = vpop.permute.xlu0 %335
    %vm337 = vcmp.eq.s32.totalorder %v14, %v336
    %vm338 = vcmp.eq.s32.totalorder %v15, %v336
    %vm339 = vcmp.eq.s32.totalorder %v16, %v336
    %vm340 = vcmp.eq.s32.totalorder %v17, %v336
    %vm341 = vcmp.eq.s32.totalorder %v18, %v336
    %vm342 = vcmp.eq.s32.totalorder %v19, %v336
    %vm343 = vcmp.eq.s32.totalorder %v20, %v336
    %v344 = vsel %vm337, 1, 0
    %v345 = vsel %vm338, 1, 0
    %v346 = vsel %vm339, 1, 0
    %v347 = vsel %vm340, 1, 0
    %v348 = vsel %vm341, 1, 0
    %v349 = vsel %vm342, 1, 0
    %v350 = vsel %vm343, 1, 0
    %v351 = vcvt.s32.f32 %v344
    %v352 = vcvt.s32.f32 %v345
    %v353 = vcvt.s32.f32 %v346
    %v354 = vcvt.s32.f32 %v347
    %v355 = vcvt.s32.f32 %v348
    %v356 = vcvt.s32.f32 %v349
    %v357 = vcvt.s32.f32 %v350
    %v358 = vadd.f32 %v326, %v351
    %v359 = vadd.f32 %v327, %v352
    %v360 = vadd.f32 %v328, %v353
    %v361 = vadd.f32 %v329, %v354
    %v362 = vadd.f32 %v330, %v355
    %v363 = vadd.f32 %v331, %v356
    %v364 = vadd.f32 %v332, %v357
    %v365 = vadd.s32 %v12, 550
    %366 = vset.pattern.permute.xlu0 11
    %367 = vperm.xlu0 %366, %v365
    %v368 = vpop.permute.xlu0 %367
    %vm369 = vcmp.eq.s32.totalorder %v14, %v368
    %vm370 = vcmp.eq.s32.totalorder %v15, %v368
    %vm371 = vcmp.eq.s32.totalorder %v16, %v368
    %vm372 = vcmp.eq.s32.totalorder %v17, %v368
    %vm373 = vcmp.eq.s32.totalorder %v18, %v368
    %vm374 = vcmp.eq.s32.totalorder %v19, %v368
    %vm375 = vcmp.eq.s32.totalorder %v20, %v368
    %v376 = vsel %vm369, 1, 0
    %v377 = vsel %vm370, 1, 0
    %v378 = vsel %vm371, 1, 0
    %v379 = vsel %vm372, 1, 0
    %v380 = vsel %vm373, 1, 0
    %v381 = vsel %vm374, 1, 0
    %v382 = vsel %vm375, 1, 0
    %v383 = vcvt.s32.f32 %v376
    %v384 = vcvt.s32.f32 %v377
    %v385 = vcvt.s32.f32 %v378
    %v386 = vcvt.s32.f32 %v379
    %v387 = vcvt.s32.f32 %v380
    %v388 = vcvt.s32.f32 %v381
    %v389 = vcvt.s32.f32 %v382
    %v390 = vadd.f32 %v358, %v383
    %v391 = vadd.f32 %v359, %v384
    %v392 = vadd.f32 %v360, %v385
    %v393 = vadd.f32 %v361, %v386
    %v394 = vadd.f32 %v362, %v387
    %v395 = vadd.f32 %v363, %v388
    %v396 = vadd.f32 %v364, %v389
    %v397 = vadd.s32 %v12, 600
    %398 = vset.pattern.permute.xlu0 12
    %399 = vperm.xlu0 %398, %v397
    %v400 = vpop.permute.xlu0 %399
    %vm401 = vcmp.eq.s32.totalorder %v14, %v400
    %vm402 = vcmp.eq.s32.totalorder %v15, %v400
    %vm403 = vcmp.eq.s32.totalorder %v16, %v400
    %vm404 = vcmp.eq.s32.totalorder %v17, %v400
    %vm405 = vcmp.eq.s32.totalorder %v18, %v400
    %vm406 = vcmp.eq.s32.totalorder %v19, %v400
    %vm407 = vcmp.eq.s32.totalorder %v20, %v400
    %v408 = vsel %vm401, 1, 0
    %v409 = vsel %vm402, 1, 0
    %v410 = vsel %vm403, 1, 0
    %v411 = vsel %vm404, 1, 0
    %v412 = vsel %vm405, 1, 0
    %v413 = vsel %vm406, 1, 0
    %v414 = vsel %vm407, 1, 0
    %v415 = vcvt.s32.f32 %v408
    %v416 = vcvt.s32.f32 %v409
    %v417 = vcvt.s32.f32 %v410
    %v418 = vcvt.s32.f32 %v411
    %v419 = vcvt.s32.f32 %v412
    %v420 = vcvt.s32.f32 %v413
    %v421 = vcvt.s32.f32 %v414
    %v422 = vadd.f32 %v390, %v415
    %v423 = vadd.f32 %v391, %v416
    %v424 = vadd.f32 %v392, %v417
    %v425 = vadd.f32 %v393, %v418
    %v426 = vadd.f32 %v394, %v419
    %v427 = vadd.f32 %v395, %v420
    %v428 = vadd.f32 %v396, %v421
    %v429 = vadd.s32 %v12, 650
    %430 = vset.pattern.permute.xlu0 13
    %431 = vperm.xlu0 %430, %v429
    %v432 = vpop.permute.xlu0 %431
    %vm433 = vcmp.eq.s32.totalorder %v14, %v432
    %vm434 = vcmp.eq.s32.totalorder %v15, %v432
    %vm435 = vcmp.eq.s32.totalorder %v16, %v432
    %vm436 = vcmp.eq.s32.totalorder %v17, %v432
    %vm437 = vcmp.eq.s32.totalorder %v18, %v432
    %vm438 = vcmp.eq.s32.totalorder %v19, %v432
    %vm439 = vcmp.eq.s32.totalorder %v20, %v432
    %v440 = vsel %vm433, 1, 0
    %v441 = vsel %vm434, 1, 0
    %v442 = vsel %vm435, 1, 0
    %v443 = vsel %vm436, 1, 0
    %v444 = vsel %vm437, 1, 0
    %v445 = vsel %vm438, 1, 0
    %v446 = vsel %vm439, 1, 0
    %v447 = vcvt.s32.f32 %v440
    %v448 = vcvt.s32.f32 %v441
    %v449 = vcvt.s32.f32 %v442
    %v450 = vcvt.s32.f32 %v443
    %v451 = vcvt.s32.f32 %v444
    %v452 = vcvt.s32.f32 %v445
    %v453 = vcvt.s32.f32 %v446
    %v454 = vadd.f32 %v422, %v447
    %v455 = vadd.f32 %v423, %v448
    %v456 = vadd.f32 %v424, %v449
    %v457 = vadd.f32 %v425, %v450
    %v458 = vadd.f32 %v426, %v451
    %v459 = vadd.f32 %v427, %v452
    %v460 = vadd.f32 %v428, %v453
    %v461 = vadd.s32 %v12, 700
    %462 = vset.pattern.permute.xlu0 14
    %463 = vperm.xlu0 %462, %v461
    %v464 = vpop.permute.xlu0 %463
    %vm465 = vcmp.eq.s32.totalorder %v14, %v464
    %vm466 = vcmp.eq.s32.totalorder %v15, %v464
    %vm467 = vcmp.eq.s32.totalorder %v16, %v464
    %vm468 = vcmp.eq.s32.totalorder %v17, %v464
    %vm469 = vcmp.eq.s32.totalorder %v18, %v464
    %vm470 = vcmp.eq.s32.totalorder %v19, %v464
    %vm471 = vcmp.eq.s32.totalorder %v20, %v464
    %v472 = vsel %vm465, 1, 0
    %v473 = vsel %vm466, 1, 0
    %v474 = vsel %vm467, 1, 0
    %v475 = vsel %vm468, 1, 0
    %v476 = vsel %vm469, 1, 0
    %v477 = vsel %vm470, 1, 0
    %v478 = vsel %vm471, 1, 0
    %v479 = vcvt.s32.f32 %v472
    %v480 = vcvt.s32.f32 %v473
    %v481 = vcvt.s32.f32 %v474
    %v482 = vcvt.s32.f32 %v475
    %v483 = vcvt.s32.f32 %v476
    %v484 = vcvt.s32.f32 %v477
    %v485 = vcvt.s32.f32 %v478
    %v486 = vadd.f32 %v454, %v479
    %v487 = vadd.f32 %v455, %v480
    %v488 = vadd.f32 %v456, %v481
    %v489 = vadd.f32 %v457, %v482
    %v490 = vadd.f32 %v458, %v483
    %v491 = vadd.f32 %v459, %v484
    %v492 = vadd.f32 %v460, %v485
    %v493 = vadd.s32 %v12, 750
    %494 = vset.pattern.permute.xlu0 15
    %495 = vperm.xlu0 %494, %v493
    %v496 = vpop.permute.xlu0 %495
    %vm497 = vcmp.eq.s32.totalorder %v14, %v496
    %vm498 = vcmp.eq.s32.totalorder %v15, %v496
    %vm499 = vcmp.eq.s32.totalorder %v16, %v496
    %vm500 = vcmp.eq.s32.totalorder %v17, %v496
    %vm501 = vcmp.eq.s32.totalorder %v18, %v496
    %vm502 = vcmp.eq.s32.totalorder %v19, %v496
    %vm503 = vcmp.eq.s32.totalorder %v20, %v496
    %v504 = vsel %vm497, 1, 0
    %v505 = vsel %vm498, 1, 0
    %v506 = vsel %vm499, 1, 0
    %v507 = vsel %vm500, 1, 0
    %v508 = vsel %vm501, 1, 0
    %v509 = vsel %vm502, 1, 0
    %v510 = vsel %vm503, 1, 0
    %v511 = vcvt.s32.f32 %v504
    %v512 = vcvt.s32.f32 %v505
    %v513 = vcvt.s32.f32 %v506
    %v514 = vcvt.s32.f32 %v507
    %v515 = vcvt.s32.f32 %v508
    %v516 = vcvt.s32.f32 %v509
    %v517 = vcvt.s32.f32 %v510
    %v518 = vadd.f32 %v486, %v511
    %v519 = vadd.f32 %v487, %v512
    %v520 = vadd.f32 %v488, %v513
    %v521 = vadd.f32 %v489, %v514
    %v522 = vadd.f32 %v490, %v515
    %v523 = vadd.f32 %v491, %v516
    %v524 = vadd.f32 %v492, %v517
    %v525 = vld [vmem:[%s1] sm:$0xff]
    %v526 = vld [vmem:[%s1 + $0x8] sm:$0xff]
    %v527 = vld [vmem:[%s1 + $0x10] sm:$0xff]
    %v528 = vld [vmem:[%s1 + $0x18] sm:$0xff]
    %v529 = vld [vmem:[%s1 + $0x20] sm:$0xff]
    %v530 = vld [vmem:[%s1 + $0x28] sm:$0xff]
    %v531 = vld [vmem:[%s1 + $0x30] sm:$0xff]
    %v532 = vld [vmem:[%s1 + $0x38] sm:$0xff]
    %v533 = vld [vmem:[%s1 + $0x40] sm:$0xff]
    %v534 = vld [vmem:[%s1 + $0x48] sm:$0xff]
    %v535 = vld [vmem:[%s1 + $0x50] sm:$0xff]
    %v536 = vld [vmem:[%s1 + $0x58] sm:$0xff]
    %v537 = vld [vmem:[%s1 + $0x60] sm:$0xff]
    %v538 = vld [vmem:[%s1 + $0x68] sm:$0xff]
    %v539 = vld [vmem:[%s1 + $0x70] sm:$0xff]
    %v540 = vld [vmem:[%s1 + $0x78] sm:$0xff]
    %v541 = vld [vmem:[%s1 + $0x80] sm:$0xff]
    %v542 = vld [vmem:[%s1 + $0x88] sm:$0xff]
    %v543 = vld [vmem:[%s1 + $0x90] sm:$0xff]
    %v544 = vld [vmem:[%s1 + $0x98] sm:$0xff]
    %v545 = vld [vmem:[%s1 + $0xa0] sm:$0xff]
    %v546 = vld [vmem:[%s1 + $0xa8] sm:$0xff]
    %v547 = vld [vmem:[%s1 + $0xb0] sm:$0xff]
    %v548 = vld [vmem:[%s1 + $0xb8] sm:$0xff]
    %v549 = vld [vmem:[%s1 + $0xc0] sm:$0xff]
    %v550 = vld [vmem:[%s1 + $0xc8] sm:$0xff]
    %v551 = vld [vmem:[%s1 + $0xd0] sm:$0xff]
    %v552 = vld [vmem:[%s1 + $0xd8] sm:$0xff]
    %v553 = vld [vmem:[%s1 + $0xe0] sm:$0xff]
    %v554 = vld [vmem:[%s1 + $0xe8] sm:$0xff]
    %v555 = vld [vmem:[%s1 + $0xf0] sm:$0xff]
    %v556 = vld [vmem:[%s1 + $0xf8] sm:$0xff]
    %v557 = vld [vmem:[%s1 + $0x100] sm:$0xff]
    %v558 = vld [vmem:[%s1 + $0x108] sm:$0xff]
    %v559 = vld [vmem:[%s1 + $0x110] sm:$0xff]
    %v560 = vld [vmem:[%s1 + $0x118] sm:$0xff]
    %v561 = vld [vmem:[%s1 + $0x120] sm:$0xff]
    %v562 = vld [vmem:[%s1 + $0x128] sm:$0xff]
    %v563 = vld [vmem:[%s1 + $0x130] sm:$0xff]
    %v564 = vld [vmem:[%s1 + $0x138] sm:$0xff]
    %v565 = vld [vmem:[%s1 + $0x140] sm:$0xff]
    %v566 = vld [vmem:[%s1 + $0x148] sm:$0xff]
    %v567 = vld [vmem:[%s1 + $0x150] sm:$0xff]
    %v568 = vld [vmem:[%s1 + $0x158] sm:$0xff]
    %v569 = vld [vmem:[%s1 + $0x160] sm:$0xff]
    %v570 = vld [vmem:[%s1 + $0x168] sm:$0xff]
    %v571 = vld [vmem:[%s1 + $0x170] sm:$0xff]
    %v572 = vld [vmem:[%s1 + $0x178] sm:$0xff]
    %v573 = vld [vmem:[%s1 + $0x180] sm:$0xff]
    %v574 = vld [vmem:[%s1 + $0x188] sm:$0xff]
    %v575 = vld [vmem:[%s1 + $0x190] sm:$0xff]
    %v576 = vld [vmem:[%s1 + $0x198] sm:$0xff]
    %v577 = vld [vmem:[%s1 + $0x1a0] sm:$0xff]
    %v578 = vld [vmem:[%s1 + $0x1a8] sm:$0xff]
    %v579 = vld [vmem:[%s1 + $0x1b0] sm:$0xff]
    %v580 = vld [vmem:[%s1 + $0x1b8] sm:$0xff]
    %v581 = vld [vmem:[%s1 + $0x1c0] sm:$0xff]
    %v582 = vld [vmem:[%s1 + $0x1c8] sm:$0xff]
    %v583 = vld [vmem:[%s1 + $0x1d0] sm:$0xff]
    %v584 = vld [vmem:[%s1 + $0x1d8] sm:$0xff]
    %v585 = vld [vmem:[%s1 + $0x1e0] sm:$0xff]
    %v586 = vld [vmem:[%s1 + $0x1e8] sm:$0xff]
    %v587 = vld [vmem:[%s1 + $0x1f0] sm:$0xff]
    %v588 = vld [vmem:[%s1 + $0x1f8] sm:$0xff]
    %v589 = vld [vmem:[%s1 + $0x200] sm:$0xff]
    %v590 = vld [vmem:[%s1 + $0x208] sm:$0xff]
    %v591 = vld [vmem:[%s1 + $0x210] sm:$0xff]
    %v592 = vld [vmem:[%s1 + $0x218] sm:$0xff]
    %v593 = vld [vmem:[%s1 + $0x220] sm:$0xff]
    %v594 = vld [vmem:[%s1 + $0x228] sm:$0xff]
    %v595 = vld [vmem:[%s1 + $0x230] sm:$0xff]
    %v596 = vld [vmem:[%s1 + $0x238] sm:$0xff]
    %v597 = vld [vmem:[%s1 + $0x240] sm:$0xff]
    %v598 = vld [vmem:[%s1 + $0x248] sm:$0xff]
    %v599 = vld [vmem:[%s1 + $0x250] sm:$0xff]
    %v600 = vld [vmem:[%s1 + $0x258] sm:$0xff]
    %v601 = vld [vmem:[%s1 + $0x260] sm:$0xff]
    %v602 = vld [vmem:[%s1 + $0x268] sm:$0xff]
    %v603 = vld [vmem:[%s1 + $0x270] sm:$0xff]
    %v604 = vld [vmem:[%s1 + $0x278] sm:$0xff]
    %v605 = vld [vmem:[%s1 + $0x280] sm:$0xff]
    %v606 = vld [vmem:[%s1 + $0x288] sm:$0xff]
    %v607 = vld [vmem:[%s1 + $0x290] sm:$0xff]
    %v608 = vld [vmem:[%s1 + $0x298] sm:$0xff]
    %v609 = vld [vmem:[%s1 + $0x2a0] sm:$0xff]
    %v610 = vld [vmem:[%s1 + $0x2a8] sm:$0xff]
    %v611 = vld [vmem:[%s1 + $0x2b0] sm:$0xff]
    %v612 = vld [vmem:[%s1 + $0x2b8] sm:$0xff]
    %v613 = vld [vmem:[%s1 + $0x2c0] sm:$0xff]
    %v614 = vld [vmem:[%s1 + $0x2c8] sm:$0xff]
    %v615 = vld [vmem:[%s1 + $0x2d0] sm:$0xff]
    %v616 = vld [vmem:[%s1 + $0x2d8] sm:$0xff]
    %v617 = vld [vmem:[%s1 + $0x2e0] sm:$0xff]
    %v618 = vld [vmem:[%s1 + $0x2e8] sm:$0xff]
    %v619 = vld [vmem:[%s1 + $0x2f0] sm:$0xff]
    %v620 = vld [vmem:[%s1 + $0x2f8] sm:$0xff]
    %v621 = vld [vmem:[%s1 + $0x300] sm:$0xff]
    %v622 = vld [vmem:[%s1 + $0x308] sm:$0xff]
    %v623 = vld [vmem:[%s1 + $0x310] sm:$0xff]
    %v624 = vld [vmem:[%s1 + $0x318] sm:$0xff]
    %v625 = vld [vmem:[%s1 + $0x320] sm:$0x1]
    %v626 = vlaneseq
    %v627 = vshrl.u32 %v626, 7
    %v628 = vsub.s32 0, %v627
    %v629 = vrot.slane %v625, %v628
    %vm630 = vcmask 261120
    %v632 = vsel %vm630, %v524, 0
    %634 = vmatprep.subr.mxu0 0.0
    %635 = vmatpush1.msra.mxu0 %v525
    %636 = vmatprep.subr.mxu0 0.0
    %637 = vmatpush1.msra.mxu0 %v526
    %638 = vmatprep.subr.mxu0 0.0
    %639 = vmatpush1.msra.mxu0 %v527
    %640 = vmatprep.subr.mxu0 0.0
    %641 = vmatpush1.msra.mxu0 %v528
    %642 = vmatprep.subr.mxu0 0.0
    %643 = vmatpush1.msra.mxu0 %v529
    %644 = vmatprep.subr.mxu0 0.0
    %645 = vmatpush1.msra.mxu0 %v530
    %646 = vmatprep.subr.mxu0 0.0
    %647 = vmatpush1.msra.mxu0 %v531
    %648 = vmatprep.subr.mxu0 0.0
    %649 = vmatpush1.msra.mxu0 %v532
    %650 = vmatprep.subr.mxu0 0.0
    %651 = vmatpush1.msra.mxu0 %v533
    %652 = vmatprep.subr.mxu0 0.0
    %653 = vmatpush1.msra.mxu0 %v534
    %654 = vmatprep.subr.mxu0 0.0
    %655 = vmatpush1.msra.mxu0 %v535
    %656 = vmatprep.subr.mxu0 0.0
    %657 = vmatpush1.msra.mxu0 %v536
    %658 = vmatprep.subr.mxu0 0.0
    %659 = vmatpush1.msra.mxu0 %v537
    %660 = vmatprep.subr.mxu0 0.0
    %661 = vmatpush1.msra.mxu0 %v538
    %662 = vmatprep.subr.mxu0 0.0
    %663 = vmatpush1.msra.mxu0 %v539
    %664 = vmatprep.subr.mxu0 0.0
    %665 = vmatpush1.msra.mxu0 %v540
    %666 = vmatprep.subr.mxu0 0.0
    %667 = vmatpush1.msra.mxu0 %v541
    %668 = vmatprep.subr.mxu0 0.0
    %669 = vmatpush1.msra.mxu0 %v542
    %670 = vmatprep.subr.mxu0 0.0
    %671 = vmatpush1.msra.mxu0 %v543
    %672 = vmatprep.subr.mxu0 0.0
    %673 = vmatpush1.msra.mxu0 %v544
    %674 = vmatprep.subr.mxu0 0.0
    %675 = vmatpush1.msra.mxu0 %v545
    %676 = vmatprep.subr.mxu0 0.0
    %677 = vmatpush1.msra.mxu0 %v546
    %678 = vmatprep.subr.mxu0 0.0
    %679 = vmatpush1.msra.mxu0 %v547
    %680 = vmatprep.subr.mxu0 0.0
    %681 = vmatpush1.msra.mxu0 %v548
    %682 = vmatprep.subr.mxu0 0.0
    %683 = vmatpush1.msra.mxu0 %v549
    %684 = vmatprep.subr.mxu0 0.0
    %685 = vmatpush1.msra.mxu0 %v550
    %686 = vmatprep.subr.mxu0 0.0
    %687 = vmatpush1.msra.mxu0 %v551
    %688 = vmatprep.subr.mxu0 0.0
    %689 = vmatpush1.msra.mxu0 %v552
    %690 = vmatprep.subr.mxu0 0.0
    %691 = vmatpush1.msra.mxu0 %v553
    %692 = vmatprep.subr.mxu0 0.0
    %693 = vmatpush1.msra.mxu0 %v554
    %694 = vmatprep.subr.mxu0 0.0
    %695 = vmatpush1.msra.mxu0 %v555
    %696 = vmatprep.subr.mxu0 0.0
    %697 = vmatpush1.msra.mxu0 %v556
    %698 = vmatprep.mubr.f32.mxu0 %v519
    %699 = vmatmul.mubr.f32.gmra.mrb[0].mxu0 %v518
    %v700 = vpop.f32.mrb[0].mxu0
    %v701 = vadd.f32 %v629, %v700
    %v702 = vpop.f32.mrb[0].mxu0
    %703 = vdwg.mxu0
    %704 = vmatprep.subr.mxu0 0.0
    %705 = vmatpush1.msra.mxu0 %v557
    %706 = vmatprep.subr.mxu0 0.0
    %707 = vmatpush1.msra.mxu0 %v558
    %708 = vmatprep.subr.mxu0 0.0
    %709 = vmatpush1.msra.mxu0 %v559
    %710 = vmatprep.subr.mxu0 0.0
    %711 = vmatpush1.msra.mxu0 %v560
    %712 = vmatprep.subr.mxu0 0.0
    %713 = vmatpush1.msra.mxu0 %v561
    %714 = vmatprep.subr.mxu0 0.0
    %715 = vmatpush1.msra.mxu0 %v562
    %716 = vmatprep.subr.mxu0 0.0
    %717 = vmatpush1.msra.mxu0 %v563
    %718 = vmatprep.subr.mxu0 0.0
    %719 = vmatpush1.msra.mxu0 %v564
    %720 = vmatprep.subr.mxu0 0.0
    %721 = vmatpush1.msra.mxu0 %v565
    %722 = vmatprep.subr.mxu0 0.0
    %723 = vmatpush1.msra.mxu0 %v566
    %724 = vmatprep.subr.mxu0 0.0
    %725 = vmatpush1.msra.mxu0 %v567
    %726 = vmatprep.subr.mxu0 0.0
    %727 = vmatpush1.msra.mxu0 %v568
    %728 = vmatprep.subr.mxu0 0.0
    %729 = vmatpush1.msra.mxu0 %v569
    %730 = vmatprep.subr.mxu0 0.0
    %731 = vmatpush1.msra.mxu0 %v570
    %732 = vmatprep.subr.mxu0 0.0
    %733 = vmatpush1.msra.mxu0 %v571
    %734 = vmatprep.subr.mxu0 0.0
    %735 = vmatpush1.msra.mxu0 %v572
    %736 = vmatprep.subr.mxu0 0.0
    %737 = vmatpush1.msra.mxu0 %v573
    %738 = vmatprep.subr.mxu0 0.0
    %739 = vmatpush1.msra.mxu0 %v574
    %740 = vmatprep.subr.mxu0 0.0
    %741 = vmatpush1.msra.mxu0 %v575
    %742 = vmatprep.subr.mxu0 0.0
    %743 = vmatpush1.msra.mxu0 %v576
    %744 = vmatprep.subr.mxu0 0.0
    %745 = vmatpush1.msra.mxu0 %v577
    %746 = vmatprep.subr.mxu0 0.0
    %747 = vmatpush1.msra.mxu0 %v578
    %748 = vmatprep.subr.mxu0 0.0
    %749 = vmatpush1.msra.mxu0 %v579
    %750 = vmatprep.subr.mxu0 0.0
    %751 = vmatpush1.msra.mxu0 %v580
    %752 = vmatprep.subr.mxu0 0.0
    %753 = vmatpush1.msra.mxu0 %v581
    %754 = vmatprep.subr.mxu0 0.0
    %755 = vmatpush1.msra.mxu0 %v582
    %756 = vmatprep.subr.mxu0 0.0
    %757 = vmatpush1.msra.mxu0 %v583
    %758 = vmatprep.subr.mxu0 0.0
    %759 = vmatpush1.msra.mxu0 %v584
    %760 = vmatprep.subr.mxu0 0.0
    %761 = vmatpush1.msra.mxu0 %v585
    %762 = vmatprep.subr.mxu0 0.0
    %763 = vmatpush1.msra.mxu0 %v586
    %764 = vmatprep.subr.mxu0 0.0
    %765 = vmatpush1.msra.mxu0 %v587
    %766 = vmatprep.subr.mxu0 0.0
    %767 = vmatpush1.msra.mxu0 %v588
    %768 = vmatprep.mubr.f32.mxu0 %v521
    %769 = vmatmul.mubr.f32.gmra.mrb[0].mxu0 %v520
    %v770 = vpop.f32.mrb[0].mxu0
    %v771 = vadd.f32 %v701, %v770
    %v772 = vpop.f32.mrb[0].mxu0
    %773 = vdwg.mxu0
    %774 = vmatprep.subr.mxu0 0.0
    %775 = vmatpush1.msra.mxu0 %v589
    %776 = vmatprep.subr.mxu0 0.0
    %777 = vmatpush1.msra.mxu0 %v590
    %778 = vmatprep.subr.mxu0 0.0
    %779 = vmatpush1.msra.mxu0 %v591
    %780 = vmatprep.subr.mxu0 0.0
    %781 = vmatpush1.msra.mxu0 %v592
    %782 = vmatprep.subr.mxu0 0.0
    %783 = vmatpush1.msra.mxu0 %v593
    %784 = vmatprep.subr.mxu0 0.0
    %785 = vmatpush1.msra.mxu0 %v594
    %786 = vmatprep.subr.mxu0 0.0
    %787 = vmatpush1.msra.mxu0 %v595
    %788 = vmatprep.subr.mxu0 0.0
    %789 = vmatpush1.msra.mxu0 %v596
    %790 = vmatprep.subr.mxu0 0.0
    %791 = vmatpush1.msra.mxu0 %v597
    %792 = vmatprep.subr.mxu0 0.0
    %793 = vmatpush1.msra.mxu0 %v598
    %794 = vmatprep.subr.mxu0 0.0
    %795 = vmatpush1.msra.mxu0 %v599
    %796 = vmatprep.subr.mxu0 0.0
    %797 = vmatpush1.msra.mxu0 %v600
    %798 = vmatprep.subr.mxu0 0.0
    %799 = vmatpush1.msra.mxu0 %v601
    %800 = vmatprep.subr.mxu0 0.0
    %801 = vmatpush1.msra.mxu0 %v602
    %802 = vmatprep.subr.mxu0 0.0
    %803 = vmatpush1.msra.mxu0 %v603
    %804 = vmatprep.subr.mxu0 0.0
    %805 = vmatpush1.msra.mxu0 %v604
    %806 = vmatprep.subr.mxu0 0.0
    %807 = vmatpush1.msra.mxu0 %v605
    %808 = vmatprep.subr.mxu0 0.0
    %809 = vmatpush1.msra.mxu0 %v606
    %810 = vmatprep.subr.mxu0 0.0
    %811 = vmatpush1.msra.mxu0 %v607
    %812 = vmatprep.subr.mxu0 0.0
    %813 = vmatpush1.msra.mxu0 %v608
    %814 = vmatprep.subr.mxu0 0.0
    %815 = vmatpush1.msra.mxu0 %v609
    %816 = vmatprep.subr.mxu0 0.0
    %817 = vmatpush1.msra.mxu0 %v610
    %818 = vmatprep.subr.mxu0 0.0
    %819 = vmatpush1.msra.mxu0 %v611
    %820 = vmatprep.subr.mxu0 0.0
    %821 = vmatpush1.msra.mxu0 %v612
    %822 = vmatprep.subr.mxu0 0.0
    %823 = vmatpush1.msra.mxu0 %v613
    %824 = vmatprep.subr.mxu0 0.0
    %825 = vmatpush1.msra.mxu0 %v614
    %826 = vmatprep.subr.mxu0 0.0
    %827 = vmatpush1.msra.mxu0 %v615
    %828 = vmatprep.subr.mxu0 0.0
    %829 = vmatpush1.msra.mxu0 %v616
    %830 = vmatprep.subr.mxu0 0.0
    %831 = vmatpush1.msra.mxu0 %v617
    %832 = vmatprep.subr.mxu0 0.0
    %833 = vmatpush1.msra.mxu0 %v618
    %834 = vmatprep.subr.mxu0 0.0
    %835 = vmatpush1.msra.mxu0 %v619
    %836 = vmatprep.subr.mxu0 0.0
    %837 = vmatpush1.msra.mxu0 %v620
    %838 = vmatprep.mubr.f32.mxu0 %v523
    %839 = vmatmul.mubr.f32.gmra.mrb[0].mxu0 %v522
    %v840 = vpop.f32.mrb[0].mxu0
    %v841 = vadd.f32 %v771, %v840
    %v842 = vpop.f32.mrb[0].mxu0
    %843 = vdwg.mxu0
    %844 = vmatprep.subr.mxu0 0.0
    %845 = vmatpush1.msra.mxu0 %v621
    %846 = vmatprep.subr.mxu0 0.0
    %847 = vmatpush1.msra.mxu0 %v622
    %848 = vmatprep.subr.mxu0 0.0
    %849 = vmatpush1.msra.mxu0 %v623
    %850 = vmatprep.subr.mxu0 0.0
    %851 = vmatpush1.msra.mxu0 %v624
    %852 = vmatprep.subr.mxu0 0.0
    %853 = vmatpush1.msra.mxu0 0.0
    %854 = vmatprep.subr.mxu0 0.0
    %855 = vmatpush1.msra.mxu0 0.0
    %856 = vmatprep.subr.mxu0 0.0
    %857 = vmatpush1.msra.mxu0 0.0
    %858 = vmatprep.subr.mxu0 0.0
    %859 = vmatpush1.msra.mxu0 0.0
    %860 = vmatprep.subr.mxu0 0.0
    %861 = vmatpush1.msra.mxu0 0.0
    %862 = vmatprep.subr.mxu0 0.0
    %863 = vmatpush1.msra.mxu0 0.0
    %864 = vmatprep.subr.mxu0 0.0
    %865 = vmatpush1.msra.mxu0 0.0
    %866 = vmatprep.subr.mxu0 0.0
    %867 = vmatpush1.msra.mxu0 0.0
    %868 = vmatprep.subr.mxu0 0.0
    %869 = vmatpush1.msra.mxu0 0.0
    %870 = vmatprep.subr.mxu0 0.0
    %871 = vmatpush1.msra.mxu0 0.0
    %872 = vmatprep.subr.mxu0 0.0
    %873 = vmatpush1.msra.mxu0 0.0
    %874 = vmatprep.subr.mxu0 0.0
    %875 = vmatpush1.msra.mxu0 0.0
    %876 = vmatprep.subr.mxu0 0.0
    %877 = vmatpush1.msra.mxu0 0.0
    %878 = vmatprep.subr.mxu0 0.0
    %879 = vmatpush1.msra.mxu0 0.0
    %880 = vmatprep.subr.mxu0 0.0
    %881 = vmatpush1.msra.mxu0 0.0
    %882 = vmatprep.subr.mxu0 0.0
    %883 = vmatpush1.msra.mxu0 0.0
    %884 = vmatprep.subr.mxu0 0.0
    %885 = vmatpush1.msra.mxu0 0.0
    %886 = vmatprep.subr.mxu0 0.0
    %887 = vmatpush1.msra.mxu0 0.0
    %888 = vmatprep.subr.mxu0 0.0
    %889 = vmatpush1.msra.mxu0 0.0
    %890 = vmatprep.subr.mxu0 0.0
    %891 = vmatpush1.msra.mxu0 0.0
    %892 = vmatprep.subr.mxu0 0.0
    %893 = vmatpush1.msra.mxu0 0.0
    %894 = vmatprep.subr.mxu0 0.0
    %895 = vmatpush1.msra.mxu0 0.0
    %896 = vmatprep.subr.mxu0 0.0
    %897 = vmatpush1.msra.mxu0 0.0
    %898 = vmatprep.subr.mxu0 0.0
    %899 = vmatpush1.msra.mxu0 0.0
    %900 = vmatprep.subr.mxu0 0.0
    %901 = vmatpush1.msra.mxu0 0.0
    %902 = vmatprep.subr.mxu0 0.0
    %903 = vmatpush1.msra.mxu0 0.0
    %904 = vmatprep.subr.mxu0 0.0
    %905 = vmatpush1.msra.mxu0 0.0
    %906 = vmatprep.subr.mxu0 0.0
    %907 = vmatpush1.msra.mxu0 0.0
    %908 = vmatprep.mubr.f32.mxu0 0.0
    %909 = vmatmul.mubr.f32.gmra.mrb[0].mxu0 %v632
    %v910 = vpop.f32.mrb[0].mxu0
    %v911 = vadd.f32 %v841, %v910
    %v912 = vpop.f32.mrb[0].mxu0
    %913 = vdwg.mxu0
    %v914 = vmax.f32 %v911, 0.0
    %v915 = vld [vmem:[%s1 + $0x328] sm:$0xff]
    %v916 = vld [vmem:[%s1 + $0x330] sm:$0xff]
    %v917 = vld [vmem:[%s1 + $0x338] sm:$0xff]
    %v918 = vld [vmem:[%s1 + $0x340] sm:$0x1]
    %v919 = vlaneseq
    %v920 = vshrl.u32 %v919, 7
    %v921 = vsub.s32 0, %v920
    %v922 = vrot.slane %v918, %v921
    %vm923 = vcmask 195584
    %v925 = vsel %vm923, %v914, 0
    %927 = vmatprep.subr.mxu0 0.0
    %928 = vmatpush1.msra.mxu0 %v915
    %929 = vmatprep.subr.mxu0 0.0
    %930 = vmatpush1.msra.mxu0 %v916
    %931 = vmatprep.subr.mxu0 0.0
    %932 = vmatpush1.msra.mxu0 %v917
    %933 = vmatprep.subr.mxu0 0.0
    %934 = vmatpush1.msra.mxu0 0.0
    %935 = vmatprep.subr.mxu0 0.0
    %936 = vmatpush1.msra.mxu0 0.0
    %937 = vmatprep.subr.mxu0 0.0
    %938 = vmatpush1.msra.mxu0 0.0
    %939 = vmatprep.subr.mxu0 0.0
    %940 = vmatpush1.msra.mxu0 0.0
    %941 = vmatprep.subr.mxu0 0.0
    %942 = vmatpush1.msra.mxu0 0.0
    %943 = vmatprep.subr.mxu0 0.0
    %944 = vmatpush1.msra.mxu0 0.0
    %945 = vmatprep.subr.mxu0 0.0
    %946 = vmatpush1.msra.mxu0 0.0
    %947 = vmatprep.subr.mxu0 0.0
    %948 = vmatpush1.msra.mxu0 0.0
    %949 = vmatprep.subr.mxu0 0.0
    %950 = vmatpush1.msra.mxu0 0.0
    %951 = vmatprep.subr.mxu0 0.0
    %952 = vmatpush1.msra.mxu0 0.0
    %953 = vmatprep.subr.mxu0 0.0
    %954 = vmatpush1.msra.mxu0 0.0
    %955 = vmatprep.subr.mxu0 0.0
    %956 = vmatpush1.msra.mxu0 0.0
    %957 = vmatprep.subr.mxu0 0.0
    %958 = vmatpush1.msra.mxu0 0.0
    %959 = vmatprep.subr.mxu0 0.0
    %960 = vmatpush1.msra.mxu0 0.0
    %961 = vmatprep.subr.mxu0 0.0
    %962 = vmatpush1.msra.mxu0 0.0
    %963 = vmatprep.subr.mxu0 0.0
    %964 = vmatpush1.msra.mxu0 0.0
    %965 = vmatprep.subr.mxu0 0.0
    %966 = vmatpush1.msra.mxu0 0.0
    %967 = vmatprep.subr.mxu0 0.0
    %968 = vmatpush1.msra.mxu0 0.0
    %969 = vmatprep.subr.mxu0 0.0
    %970 = vmatpush1.msra.mxu0 0.0
    %971 = vmatprep.subr.mxu0 0.0
    %972 = vmatpush1.msra.mxu0 0.0
    %973 = vmatprep.subr.mxu0 0.0
    %974 = vmatpush1.msra.mxu0 0.0
    %975 = vmatprep.subr.mxu0 0.0
    %976 = vmatpush1.msra.mxu0 0.0
    %977 = vmatprep.subr.mxu0 0.0
    %978 = vmatpush1.msra.mxu0 0.0
    %979 = vmatprep.subr.mxu0 0.0
    %980 = vmatpush1.msra.mxu0 0.0
    %981 = vmatprep.subr.mxu0 0.0
    %982 = vmatpush1.msra.mxu0 0.0
    %983 = vmatprep.subr.mxu0 0.0
    %984 = vmatpush1.msra.mxu0 0.0
    %985 = vmatprep.subr.mxu0 0.0
    %986 = vmatpush1.msra.mxu0 0.0
    %987 = vmatprep.subr.mxu0 0.0
    %988 = vmatpush1.msra.mxu0 0.0
    %989 = vmatprep.subr.mxu0 0.0
    %990 = vmatpush1.msra.mxu0 0.0
    %991 = vmatprep.mubr.f32.mxu0 0.0
    %992 = vmatmul.mubr.f32.gmra.mrb[0].mxu0 %v925
    %v993 = vpop.f32.mrb[0].mxu0
    %v994 = vadd.f32 %v922, %v993
    %v995 = vpop.f32.mrb[0].mxu0
    %996 = vdwg.mxu0
    %vm997 = vcmask 9216
    %998 = vst.msk [vmem:[#allocation2] sm:$0x3] %vm997, %v994
    // Predicated region
    $region10: #{forward.1} parent=1 // pred_check
      _
    $region11: #{forward.1} parent=1 // pred_check_branch
      %1000 = sbr.rel (0) target = $region13
    $region12: #{forward.1} parent=1 // pred_region
      %s1002 = ssub.s32 32, 32
      %1003 = vsyncadd [#allocation3], %s1002
      %s1005 = sshll.u32 [#allocation2], 4
      %s1006 = int_to_ptr.vmem [resolvable:$true] %s1005
      %1008 = dma.vmem_to_hbm [thread:$0]  %s1006, 32, %s2, [#allocation3]
    $region13: #{forward.1} parent=1 // pred_fallthru
      _
    // Predicated region
    $region14: #{forward.1} parent=1 // pred_check
      _
    $region15: #{forward.1} parent=1 // pred_check_branch
      %1010 = sbr.rel (0) target = $region17
    $region16: #{forward.1} parent=1 // pred_region
      %1011 = dma.done [#allocation3], 32
    $region17: #{forward.1} parent=1 // pred_fallthru
      _
    %1012 = vsyncpa [#allocation3], 1

</llo_original>
